<compile_context>
chip_gen: v6e
topology: v6e:2x2x1
jax: 0.10.0
libtpu: 0.0.40
codegen_flags: <defaults>
</compile_context>

<pallas_src>
import functools

import jax
import jax.numpy as jnp
from jax.experimental import pallas as pl
from jax.experimental.pallas import tpu as pltpu

VMEM = pltpu.MemorySpace.VMEM
SMEM = pltpu.MemorySpace.SMEM
BN_EPS = 1e-5          # PyTorch BatchNorm1d default
NORM_EPS = 1e-12       # PyTorch F.normalize default

PROJ_PARAM_NAMES = ("proj_w1", "proj_g", "proj_b", "proj_w2")


# ----------------------------- Pallas kernels ------------------------------

def _ema_kernel(*refs, m):
    """Fused EMA over the small momentum params: out = mom*m + base*(1-m)."""
    n = len(refs) // 3
    mom_refs, base_refs, out_refs = refs[:n], refs[n:2 * n], refs[2 * n:]
    for pm, pb, po in zip(mom_refs, base_refs, out_refs):
        po[...] = pm[...] * m + pb[...] * (1.0 - m)


def _fused_forward_kernel(
        x_ref,                                    # [2B, tk] bf16 (view1; view2)
        bb_ref, mbb_ref,                          # [tk, mlp_dim] f32 backbones
        pw1_ref, pg_ref, pb_ref, pw2_ref,         # base projector
        dw1_ref, dg_ref, db_ref, dw2_ref,         # predictor
        mpw1_ref, mpg_ref, mpb_ref, mpw2_ref,     # momentum projector (EMA'd)
        loss_ref, mbb_out_ref,                    # outputs: SMEM (1,1), new mbb
        acc_ref,                                  # f32 scratch [2B, 2*mlp_dim]
        *, B, T, m):
    k = pl.program_id(0)
    mlp_dim = bb_ref.shape[1]

    @pl.when(k == 0)
    def _init():
        acc_ref[...] = jnp.zeros_like(acc_ref)
        loss_ref[0, 0] = 0.0

    # Fused momentum-backbone EMA for this K tile (exact f32) + writeback.
    mbb_new = mbb_ref[...] * m + bb_ref[...] * (1.0 - m)
    mbb_out_ref[...] = mbb_new

    # One wide MXU run per K step: [2B, tk] @ [tk, 2*mlp_dim], bf16 in, f32 acc.
    rhs = jnp.concatenate(
        [bb_ref[...].astype(jnp.bfloat16), mbb_new.astype(jnp.bfloat16)], axis=1)
    acc_ref[...] += jnp.dot(x_ref[...], rhs, preferred_element_type=jnp.float32)

    @pl.when(k == pl.num_programs(0) - 1)
    def _finish():
        def bn_per_view(h, gamma=None, beta=None):
            # Training-mode BatchNorm1d (biased variance), computed per view
            # (rows 0:B and B:2B) via a (2, B, D) reshape — no slice/concat
            # materialization in the epilogue.
            d = h.shape[-1]
            hv = h.reshape(2, B, d)
            mu = jnp.mean(hv, axis=1, keepdims=True)
            var = jnp.mean(jnp.square(hv - mu), axis=1, keepdims=True)
            o = ((hv - mu) * jax.lax.rsqrt(var + BN_EPS)).reshape(2 * B, d)
            if gamma is not None:
                o = o * gamma + beta
            return o

        def mlp2(h, w1_ref, g_ref, b_ref, w2_ref):
            # Linear -> BN(affine) -> ReLU -> Linear -> BN(no affine);
            # weight refs are already bf16, activations cast per matmul.
            z = jnp.dot(h.astype(jnp.bfloat16), w1_ref[...],
                        preferred_element_type=jnp.float32)
            z = jnp.maximum(bn_per_view(z, g_ref[...], b_ref[...]), 0.0)
            z = jnp.dot(z.astype(jnp.bfloat16), w2_ref[...],
                        preferred_element_type=jnp.float32)
            return bn_per_view(z)

        acc = acc_ref[...]
        hq, hk = acc[:, :mlp_dim], acc[:, mlp_dim:]

        # queries: base projector + predictor (rows 0:B = q1, B:2B = q2)
        q = mlp2(hq, pw1_ref, pg_ref, pb_ref, pw2_ref)
        q = mlp2(q, dw1_ref, dg_ref, db_ref, dw2_ref)
        # keys: momentum projector (rows 0:B = k1, B:2B = k2)
        kk = mlp2(hk, mpw1_ref, mpg_ref, mpb_ref, mpw2_ref)

        # F.normalize(x, dim=1): x / max(||x||, eps) == x * rsqrt(max(||x||^2, eps^2))
        def l2n(v):
            ss = jnp.sum(v * v, axis=1, keepdims=True)
            return v * jax.lax.rsqrt(jnp.maximum(ss, NORM_EPS * NORM_EPS))

        qn, kn = l2n(q), l2n(kk)

        inv_t = 1.0 / T
        dn = (((1,), (1,)), ((), ()))  # contract last axes; no kn.T materialized

        def ce(qv, kv):
            # CrossEntropy(logits = qv @ kv.T / T, labels = arange(B));
            # single device rank 0 => concat_all_gather is the identity.
            logits = jax.lax.dot_general(
                qv, kv, dn, preferred_element_type=jnp.float32) * inv_t
            pos = jnp.sum(qv * kv, axis=1, keepdims=True) * inv_t  # diag logit
            row_max = jnp.max(logits, axis=1, keepdims=True)
            lse = jnp.log(jnp.sum(jnp.exp(logits - row_max), axis=1,
                                  keepdims=True)) + row_max
            return jnp.mean(lse - pos)

        q1, q2 = qn[:B], qn[B:]
        k1, k2 = kn[:B], kn[B:]
        loss_ref[0, 0] = (ce(q1, k2) + ce(q2, k1)) * (2.0 * T)


# ----------------------------- wrappers -------------------------------------

def ema_update_projector(m, mom_params, params, names=PROJ_PARAM_NAMES):
    """Fused EMA kernel for the small (projector) momentum parameters only.

    The backbone EMA is fused into the main forward kernel.  Momentum inputs
    are aliased to the outputs (no extra HBM allocation).
    # TODO(synk): at real ResNet scale this kernel should tile each parameter
    # with a grid instead of whole-array VMEM residency.
    """
    moms = [mom_params[n] for n in names]
    bases = [params[n] for n in names]
    n = len(names)
    outs = pl.pallas_call(
        functools.partial(_ema_kernel, m=float(m)),
        out_shape=tuple(jax.ShapeDtypeStruct(p.shape, jnp.float32) for p in moms),
        in_specs=[pl.BlockSpec(memory_space=VMEM)] * (2 * n),
        out_specs=tuple(pl.BlockSpec(memory_space=VMEM) for _ in range(n)),
        input_output_aliases={i: i for i in range(n)},
    )(*moms, *bases)
    return dict(zip(names, outs))


def rfmaco_forward(params, mom_params, x1, x2, m, T=1.0, tk=1024):
    B = x1.shape[0]
    twoB = 2 * B
    # Flatten both views and stack; stream the activation as bf16 (halves HBM
    # bytes + removes per-tile VPU casts inside the kernel).
    x = jnp.concatenate([x1.reshape(B, -1), x2.reshape(B, -1)],
                        axis=0).astype(jnp.bfloat16)
    F_in = x.shape[1]

    # 1) EMA of the small momentum params (projector); the backbone EMA is
    #    fused into the forward kernel's K loop.
    mom_proj = ema_update_projector(m, mom_params, params)

    # 2) K tiling: shortest possible grid (per-step overhead ~0.35 us and a
    #    full scratch RMW per step).  For the demo F_in=768 -> tk=768, n_k=1.
    f_round = -(-F_in // 128) * 128
    tk = min(tk, f_round)
    F_pad = -(-F_in // tk) * tk
    pad = F_pad - F_in
    bb, mbb = params["backbone"], mom_params["backbone"]
    if pad:
        # TODO(synk): a masked last tile would avoid these pads for
        # non-tile-multiple feature sizes; zero-padding is a numerical no-op.
        x = jnp.pad(x, ((0, 0), (0, pad)))
        bb = jnp.pad(bb, ((0, pad), (0, 0)))
        mbb = jnp.pad(mbb, ((0, pad), (0, 0)))

    mlp_dim = bb.shape[1]
    n_k = F_pad // tk

    # Resident MLP matmul weights streamed/held as bf16 (halves HBM + VMEM
    # footprint; important within v7x's 64 MiB VMEM).  BN affine stays f32.
    def w16(a):
        return a.astype(jnp.bfloat16)

    def whole(p):  # parameter resident in VMEM across all grid steps
        return pl.BlockSpec(p.shape, lambda k: (0, 0))

    pw1, pw2 = w16(params["proj_w1"]), w16(params["proj_w2"])
    dw1, dw2 = w16(params["pred_w1"]), w16(params["pred_w2"])
    mpw1, mpw2 = w16(mom_proj["proj_w1"]), w16(mom_proj["proj_w2"])
    pg, pb_ = params["proj_g"], params["proj_b"]
    dg, db = params["pred_g"], params["pred_b"]
    mpg, mpb = mom_proj["proj_g"], mom_proj["proj_b"]

    loss, mbb_new = pl.pallas_call(
        functools.partial(_fused_forward_kernel, B=B, T=float(T), m=float(m)),
        out_shape=(jax.ShapeDtypeStruct((1, 1), jnp.float32),
                   jax.ShapeDtypeStruct((F_pad, mlp_dim), jnp.float32)),
        grid_spec=pltpu.PrefetchScalarGridSpec(
            num_scalar_prefetch=0,
            grid=(n_k,),
            in_specs=[
                pl.BlockSpec((twoB, tk), lambda k: (0, k)),        # x tile (bf16)
                pl.BlockSpec((tk, mlp_dim), lambda k: (k, 0)),     # backbone
                pl.BlockSpec((tk, mlp_dim), lambda k: (k, 0)),     # mom backbone
                whole(pw1), whole(pg), whole(pb_), whole(pw2),
                whole(dw1), whole(dg), whole(db), whole(dw2),
                whole(mpw1), whole(mpg), whole(mpb), whole(mpw2),
            ],
            out_specs=(
                pl.BlockSpec((1, 1), lambda k: (0, 0), memory_space=SMEM),
                pl.BlockSpec((tk, mlp_dim), lambda k: (k, 0)),     # new mom backbone
            ),
            scratch_shapes=[pltpu.VMEM((twoB, 2 * mlp_dim), jnp.float32)],
        ),
        # old momentum backbone (input 2) aliased to the EMA-updated output 1
        input_output_aliases={2: 1},
        compiler_params=pltpu.CompilerParams(
            dimension_semantics=("arbitrary",),
            vmem_limit_bytes=64 * 1024 * 1024),
    )(x, bb, mbb,
      pw1, pg, pb_, pw2, dw1, dg, db, dw2, mpw1, mpg, mpb, mpw2)

    mbb_new = mbb_new[:F_in] if pad else mbb_new
    mom_new = dict(mom_proj)
    mom_new["backbone"] = mbb_new
    return loss[0, 0], mom_new


# ----------------------------- main ------------------------------------------

if __name__ == "__main__":
    B, C, H, W = 8, 3, 16, 16
    mlp_dim, dim, T = 256, 128, 1.0      # lane-dense (multiples of 128)
    F_in = C * H * W

    key = jax.random.PRNGKey(0)
    keys = jax.random.split(key, 8)
    x1 = jax.random.normal(keys[0], (B, C, H, W), jnp.float32)
    x2 = jax.random.normal(keys[1], (B, C, H, W), jnp.float32)

    def w_init(k, shape):
        return jax.random.normal(k, shape, jnp.float32) / jnp.sqrt(shape[0])

    params = {
        "backbone": w_init(keys[2], (F_in, mlp_dim)),
        "proj_w1": w_init(keys[3], (mlp_dim, mlp_dim)),
        "proj_g": jnp.ones((1, mlp_dim), jnp.float32),
        "proj_b": jnp.zeros((1, mlp_dim), jnp.float32),
        "proj_w2": w_init(keys[4], (mlp_dim, dim)),
        "pred_w1": w_init(keys[5], (dim, mlp_dim)),
        "pred_g": jnp.ones((1, mlp_dim), jnp.float32),
        "pred_b": jnp.zeros((1, mlp_dim), jnp.float32),
        "pred_w2": w_init(keys[6], (mlp_dim, dim)),
    }
    # momentum encoder starts as an exact copy of the base encoder (per __init__)
    mom_params = {name: params[name]
                  for name in ("backbone",) + PROJ_PARAM_NAMES}

    loss, mom_new = rfmaco_forward(params, mom_params, x1, x2, m=0.99, T=T)
    jax.block_until_ready((loss, mom_new))
    assert loss.shape == () and bool(jnp.isfinite(loss))
    print("KERNEL_OK")
</pallas_src>

<mosaic_0001>
module attributes {stable_mosaic.version = 11 : i64} {
  func.func @_ema_kernel(%arg0: memref<256x256xf32, #tpu.memory_space<vmem>>, %arg1: memref<1x256xf32, #tpu.memory_space<vmem>>, %arg2: memref<1x256xf32, #tpu.memory_space<vmem>>, %arg3: memref<256x128xf32, #tpu.memory_space<vmem>>, %arg4: memref<256x256xf32, #tpu.memory_space<vmem>>, %arg5: memref<1x256xf32, #tpu.memory_space<vmem>>, %arg6: memref<1x256xf32, #tpu.memory_space<vmem>>, %arg7: memref<256x128xf32, #tpu.memory_space<vmem>>, %arg8: memref<256x256xf32, #tpu.memory_space<vmem>>, %arg9: memref<1x256xf32, #tpu.memory_space<vmem>>, %arg10: memref<1x256xf32, #tpu.memory_space<vmem>>, %arg11: memref<256x128xf32, #tpu.memory_space<vmem>>) attributes {dimension_semantics = [], scalar_prefetch = 0 : i64, scratch_operands = 0 : i64, tpu.core_type = #tpu.core_type<tc>} {
    %c0 = arith.constant 0 : index
    %c0_0 = arith.constant 0 : index
    %0 = vector.load %arg0[%c0, %c0_0] : memref<256x256xf32, #tpu.memory_space<vmem>>, vector<256x256xf32>
    %cst = arith.constant 9.900000e-01 : f32
    %1 = vector.broadcast %cst : f32 to vector<256x256xf32>
    %2 = arith.mulf %0, %1 : vector<256x256xf32>
    %c0_1 = arith.constant 0 : index
    %c0_2 = arith.constant 0 : index
    %3 = vector.load %arg4[%c0_1, %c0_2] : memref<256x256xf32, #tpu.memory_space<vmem>>, vector<256x256xf32>
    %cst_3 = arith.constant 0.00999999977 : f32
    %4 = vector.broadcast %cst_3 : f32 to vector<256x256xf32>
    %5 = arith.mulf %3, %4 : vector<256x256xf32>
    %6 = arith.addf %2, %5 : vector<256x256xf32>
    %c0_4 = arith.constant 0 : index
    %c0_5 = arith.constant 0 : index
    %7 = vector.load %arg8[%c0_4, %c0_5] : memref<256x256xf32, #tpu.memory_space<vmem>>, vector<256x256xf32>
    tpu.vector_store %arg8[%c0_4, %c0_5], %6 {strides = array<i32>} : memref<256x256xf32, #tpu.memory_space<vmem>>, vector<256x256xf32>,
    %c0_6 = arith.constant 0 : index
    %c0_7 = arith.constant 0 : index
    %8 = vector.load %arg1[%c0_6, %c0_7] : memref<1x256xf32, #tpu.memory_space<vmem>>, vector<1x256xf32>
    %cst_8 = arith.constant 9.900000e-01 : f32
    %9 = vector.broadcast %cst_8 : f32 to vector<1x256xf32>
    %10 = arith.mulf %8, %9 : vector<1x256xf32>
    %c0_9 = arith.constant 0 : index
    %c0_10 = arith.constant 0 : index
    %11 = vector.load %arg5[%c0_9, %c0_10] : memref<1x256xf32, #tpu.memory_space<vmem>>, vector<1x256xf32>
    %cst_11 = arith.constant 0.00999999977 : f32
    %12 = vector.broadcast %cst_11 : f32 to vector<1x256xf32>
    %13 = arith.mulf %11, %12 : vector<1x256xf32>
    %14 = arith.addf %10, %13 : vector<1x256xf32>
    %c0_12 = arith.constant 0 : index
    %c0_13 = arith.constant 0 : index
    %15 = vector.load %arg9[%c0_12, %c0_13] : memref<1x256xf32, #tpu.memory_space<vmem>>, vector<1x256xf32>
    tpu.vector_store %arg9[%c0_12, %c0_13], %14 {strides = array<i32>} : memref<1x256xf32, #tpu.memory_space<vmem>>, vector<1x256xf32>,
    %c0_14 = arith.constant 0 : index
    %c0_15 = arith.constant 0 : index
    %16 = vector.load %arg2[%c0_14, %c0_15] : memref<1x256xf32, #tpu.memory_space<vmem>>, vector<1x256xf32>
    %cst_16 = arith.constant 9.900000e-01 : f32
    %17 = vector.broadcast %cst_16 : f32 to vector<1x256xf32>
    %18 = arith.mulf %16, %17 : vector<1x256xf32>
    %c0_17 = arith.constant 0 : index
    %c0_18 = arith.constant 0 : index
    %19 = vector.load %arg6[%c0_17, %c0_18] : memref<1x256xf32, #tpu.memory_space<vmem>>, vector<1x256xf32>
    %cst_19 = arith.constant 0.00999999977 : f32
    %20 = vector.broadcast %cst_19 : f32 to vector<1x256xf32>
    %21 = arith.mulf %19, %20 : vector<1x256xf32>
    %22 = arith.addf %18, %21 : vector<1x256xf32>
    %c0_20 = arith.constant 0 : index
    %c0_21 = arith.constant 0 : index
    %23 = vector.load %arg10[%c0_20, %c0_21] : memref<1x256xf32, #tpu.memory_space<vmem>>, vector<1x256xf32>
    tpu.vector_store %arg10[%c0_20, %c0_21], %22 {strides = array<i32>} : memref<1x256xf32, #tpu.memory_space<vmem>>, vector<1x256xf32>,
    %c0_22 = arith.constant 0 : index
    %c0_23 = arith.constant 0 : index
    %24 = vector.load %arg3[%c0_22, %c0_23] : memref<256x128xf32, #tpu.memory_space<vmem>>, vector<256x128xf32>
    %cst_24 = arith.constant 9.900000e-01 : f32
    %25 = vector.broadcast %cst_24 : f32 to vector<256x128xf32>
    %26 = arith.mulf %24, %25 : vector<256x128xf32>
    %c0_25 = arith.constant 0 : index
    %c0_26 = arith.constant 0 : index
    %27 = vector.load %arg7[%c0_25, %c0_26] : memref<256x128xf32, #tpu.memory_space<vmem>>, vector<256x128xf32>
    %cst_27 = arith.constant 0.00999999977 : f32
    %28 = vector.broadcast %cst_27 : f32 to vector<256x128xf32>
    %29 = arith.mulf %27, %28 : vector<256x128xf32>
    %30 = arith.addf %26, %29 : vector<256x128xf32>
    %c0_28 = arith.constant 0 : index
    %c0_29 = arith.constant 0 : index
    %31 = vector.load %arg11[%c0_28, %c0_29] : memref<256x128xf32, #tpu.memory_space<vmem>>, vector<256x128xf32>
    tpu.vector_store %arg11[%c0_28, %c0_29], %30 {strides = array<i32>} : memref<256x128xf32, #tpu.memory_space<vmem>>, vector<256x128xf32>,
    return
  }
}

</mosaic_0001>

<llo_original>
// kernel: tpu_custom_call.1
$region0: #{tpu_custom_call.1}
  #allocation0 [shape = 'u32[]', space=smem, size = 0x4, offset = 0x4, fixed_abs, tag = 'smem constant byte address 0x4 - core index']
  #allocation1 [shape = 'u32[144,128]{1,0:T(1,128)}', space=vmem, size = 0x12000, scoped, tag = 'internal scratch']
  %s0 = inlined_call_operand.hbm [shape: f32[256,256], index: 0, kind: input, shape index: {}, may-alias: {0,8}]
  %s1 = inlined_call_operand.hbm [shape: f32[1,256], index: 1, kind: input, shape index: {}, may-alias: {1,9}]
  %s2 = inlined_call_operand.hbm [shape: f32[1,256], index: 2, kind: input, shape index: {}, may-alias: {2,10}]
  %s3 = inlined_call_operand.hbm [shape: f32[256,128], index: 3, kind: input, shape index: {}, may-alias: {3,11}]
  %s4 = inlined_call_operand.vmem [shape: f32[256,256], index: 4, kind: input, shape index: {}]
  %s5 = inlined_call_operand.vmem [shape: f32[1,256], index: 5, kind: input, shape index: {}]
  %s6 = inlined_call_operand.vmem [shape: f32[1,256], index: 6, kind: input, shape index: {}]
  %s7 = inlined_call_operand.vmem [shape: f32[256,128], index: 7, kind: input, shape index: {}]
  %s8 = inlined_call_operand.hbm [shape: f32[256,256], index: 8, kind: output, shape index: {0}, may-alias: {0,8}]
  %s9 = inlined_call_operand.hbm [shape: f32[1,256], index: 9, kind: output, shape index: {1}, may-alias: {1,9}]
  %s10 = inlined_call_operand.hbm [shape: f32[1,256], index: 10, kind: output, shape index: {2}, may-alias: {2,10}]
  %s11 = inlined_call_operand.hbm [shape: f32[256,128], index: 11, kind: output, shape index: {3}, may-alias: {3,11}]
  %12 = xla_tuple %s8, %s9, %s10, %s11
  %s13 = sld [smem:[#allocation0]]
  $region82: #{tpu_custom_call.1} parent=0
    _
  %s15 = ssub.s32 1, %s13
  %s16 = scalar_select 0, %s15, %s13
  $region1: #{tpu_custom_call.1} parent=0
    #allocation2 [shape = 'u8[262144]{0}', space=vmem, size = 0x40000, scoped, tag = 'input window, operand 0, single buffered']
    #allocation3 [shape = 's32[1]{0}', space=sflag, size = 0x4, scoped, tag = 'scoped memory for tpu_custom_call.1']
    #allocation4 [shape = 's32[1]{0}', space=sflag, size = 0x4, scoped, tag = 'scoped memory for tpu_custom_call.1']
    #allocation5 [shape = 'u8[1024]{0}', space=vmem, size = 0x400, scoped, tag = 'input window, operand 1, single buffered']
    #allocation6 [shape = 's32[1]{0}', space=sflag, size = 0x4, scoped, tag = 'scoped memory for tpu_custom_call.1']
    #allocation7 [shape = 'u8[1024]{0}', space=vmem, size = 0x400, scoped, tag = 'input window, operand 2, single buffered']
    #allocation8 [shape = 'u8[131072]{0}', space=vmem, size = 0x20000, scoped, tag = 'input window, operand 3, single buffered']
    #allocation9 [shape = 's32[1]{0}', space=sflag, size = 0x4, scoped, tag = 'scoped memory for tpu_custom_call.1']
    #allocation10 [shape = 'u8[262144]{0}', space=vmem, size = 0x40000, scoped, tag = 'output window, operand 0, single buffered']
    #allocation11 [shape = 'u8[1024]{0}', space=vmem, size = 0x400, scoped, tag = 'output window, operand 1, single buffered']
    #allocation12 [shape = 's32[1]{0}', space=sflag, size = 0x4, scoped, tag = 'scoped memory for tpu_custom_call.1']
    #allocation13 [shape = 'u8[1024]{0}', space=vmem, size = 0x400, scoped, tag = 'output window, operand 2, single buffered']
    #allocation14 [shape = 'u8[131072]{0}', space=vmem, size = 0x20000, scoped, tag = 'output window, operand 3, single buffered']
    #allocation15 [shape = 's32[1]{0}', space=sflag, size = 0x4, scoped, tag = 'scoped memory for tpu_custom_call.1']
    %17 = vsyncpa [#allocation3], 0
    %18 = vsyncpa [#allocation6], 0
    %19 = vsyncpa [#allocation9], 0
    %20 = vsyncpa [#allocation4], 0
    %21 = vsyncpa [#allocation12], 0
    %22 = vsyncpa [#allocation15], 0
    // Predicated region
    $region2: #{tpu_custom_call.1} parent=1 // pred_check
      _
    $region3: #{tpu_custom_call.1} parent=1 // pred_check_branch
      %24 = sbr.rel (0) target = $region5
    $region4: #{tpu_custom_call.1} parent=1 // pred_region
      %s26 = ssub.s32 8192, 8192
      %27 = vsyncadd [#allocation3], %s26
      %s28 = sshll.u32 [#allocation2], 4
      %s29 = int_to_ptr.vmem [resolvable:$true] %s28
      %34 = dma.hbm_to_vmem [thread:$0]  %s0, 8192, %s29, [#allocation3], 256, 256, 16
    $region5: #{tpu_custom_call.1} parent=1 // pred_fallthru
      _
    // Predicated region
    $region6: #{tpu_custom_call.1} parent=1 // pred_check
      _
    $region7: #{tpu_custom_call.1} parent=1 // pred_check_branch
      %36 = sbr.rel (0) target = $region9
    $region8: #{tpu_custom_call.1} parent=1 // pred_region
      %s38 = ssub.s32 32, 32
      %39 = vsyncadd [#allocation6], %s38
      %s41 = sshll.u32 [#allocation5], 4
      %s42 = int_to_ptr.vmem [resolvable:$true] %s41
      %44 = dma.hbm_to_vmem [thread:$0]  %s1, 32, %s42, [#allocation6]
    $region9: #{tpu_custom_call.1} parent=1 // pred_fallthru
      _
    // Predicated region
    $region10: #{tpu_custom_call.1} parent=1 // pred_check
      _
    $region11: #{tpu_custom_call.1} parent=1 // pred_check_branch
      %46 = sbr.rel (0) target = $region13
    $region12: #{tpu_custom_call.1} parent=1 // pred_region
      %s48 = ssub.s32 32, 32
      %49 = vsyncadd [#allocation6], %s48
      %s51 = sshll.u32 [#allocation7], 4
      %s52 = int_to_ptr.vmem [resolvable:$true] %s51
      %54 = dma.hbm_to_vmem [thread:$0]  %s2, 32, %s52, [#allocation6]
    $region13: #{tpu_custom_call.1} parent=1 // pred_fallthru
      _
    // Predicated region
    $region14: #{tpu_custom_call.1} parent=1 // pred_check
      _
    $region15: #{tpu_custom_call.1} parent=1 // pred_check_branch
      %56 = sbr.rel (0) target = $region17
    $region16: #{tpu_custom_call.1} parent=1 // pred_region
      %s58 = ssub.s32 4096, 4096
      %59 = vsyncadd [#allocation9], %s58
      %s60 = sshll.u32 [#allocation8], 4
      %s61 = int_to_ptr.vmem [resolvable:$true] %s60
      %66 = dma.hbm_to_vmem [thread:$0]  %s3, 4096, %s61, [#allocation9], 128, 128, 8
    $region17: #{tpu_custom_call.1} parent=1 // pred_fallthru
      _
    // Predicated region
    $region18: #{tpu_custom_call.1} parent=1 // pred_check
      _
    $region19: #{tpu_custom_call.1} parent=1 // pred_check_branch
      %68 = sbr.rel (0) target = $region21
    $region20: #{tpu_custom_call.1} parent=1 // pred_region
      _
    $region21: #{tpu_custom_call.1} parent=1 // pred_fallthru
      _
    // Predicated region
    $region22: #{tpu_custom_call.1} parent=1 // pred_check
      _
    $region23: #{tpu_custom_call.1} parent=1 // pred_check_branch
      %70 = sbr.rel (0) target = $region25
    $region24: #{tpu_custom_call.1} parent=1 // pred_region
      _
    $region25: #{tpu_custom_call.1} parent=1 // pred_fallthru
      _
    // Predicated region
    $region26: #{tpu_custom_call.1} parent=1 // pred_check
      _
    $region27: #{tpu_custom_call.1} parent=1 // pred_check_branch
      %72 = sbr.rel (0) target = $region29
    $region28: #{tpu_custom_call.1} parent=1 // pred_region
      _
    $region29: #{tpu_custom_call.1} parent=1 // pred_fallthru
      _
    // Predicated region
    $region30: #{tpu_custom_call.1} parent=1 // pred_check
      _
    $region31: #{tpu_custom_call.1} parent=1 // pred_check_branch
      %74 = sbr.rel (0) target = $region33
    $region32: #{tpu_custom_call.1} parent=1 // pred_region
      _
    $region33: #{tpu_custom_call.1} parent=1 // pred_fallthru
      _
    // Predicated region
    $region34: #{tpu_custom_call.1} parent=1 // pred_check
      _
    $region35: #{tpu_custom_call.1} parent=1 // pred_check_branch
      %76 = sbr.rel (0) target = $region37
    $region36: #{tpu_custom_call.1} parent=1 // pred_region
      %77 = dma.done [#allocation3], 8192
    $region37: #{tpu_custom_call.1} parent=1 // pred_fallthru
      _
    // Predicated region
    $region38: #{tpu_custom_call.1} parent=1 // pred_check
      _
    $region39: #{tpu_custom_call.1} parent=1 // pred_check_branch
      %79 = sbr.rel (0) target = $region41
    $region40: #{tpu_custom_call.1} parent=1 // pred_region
      %80 = dma.done [#allocation6], 32
    $region41: #{tpu_custom_call.1} parent=1 // pred_fallthru
      _
    // Predicated region
    $region42: #{tpu_custom_call.1} parent=1 // pred_check
      _
    $region43: #{tpu_custom_call.1} parent=1 // pred_check_branch
      %82 = sbr.rel (0) target = $region45
    $region44: #{tpu_custom_call.1} parent=1 // pred_region
      %83 = dma.done [#allocation6], 32
    $region45: #{tpu_custom_call.1} parent=1 // pred_fallthru
      _
    // Predicated region
    $region46: #{tpu_custom_call.1} parent=1 // pred_check
      _
    $region47: #{tpu_custom_call.1} parent=1 // pred_check_branch
      %85 = sbr.rel (0) target = $region49
    $region48: #{tpu_custom_call.1} parent=1 // pred_region
      %86 = dma.done [#allocation9], 4096
    $region49: #{tpu_custom_call.1} parent=1 // pred_fallthru
      _
    %v87 = vld [vmem:[#allocation2] sm:$0xff]
    %v88 = vld [vmem:[#allocation2 + $0x8] sm:$0xff]
    %v89 = vld [vmem:[#allocation2 + $0x10] sm:$0xff]
    %v90 = vld [vmem:[#allocation2 + $0x18] sm:$0xff]
    %v91 = vld [vmem:[#allocation2 + $0x20] sm:$0xff]
    %v92 = vld [vmem:[#allocation2 + $0x28] sm:$0xff]
    %v93 = vld [vmem:[#allocation2 + $0x30] sm:$0xff]
    %v94 = vld [vmem:[#allocation2 + $0x38] sm:$0xff]
    %v95 = vld [vmem:[#allocation2 + $0x40] sm:$0xff]
    %v96 = vld [vmem:[#allocation2 + $0x48] sm:$0xff]
    %v97 = vld [vmem:[#allocation2 + $0x50] sm:$0xff]
    %v98 = vld [vmem:[#allocation2 + $0x58] sm:$0xff]
    %v99 = vld [vmem:[#allocation2 + $0x60] sm:$0xff]
    %v100 = vld [vmem:[#allocation2 + $0x68] sm:$0xff]
    %v101 = vld [vmem:[#allocation2 + $0x70] sm:$0xff]
    %v102 = vld [vmem:[#allocation2 + $0x78] sm:$0xff]
    %v103 = vld [vmem:[#allocation2 + $0x80] sm:$0xff]
    %v104 = vld [vmem:[#allocation2 + $0x88] sm:$0xff]
    %v105 = vld [vmem:[#allocation2 + $0x90] sm:$0xff]
    %v106 = vld [vmem:[#allocation2 + $0x98] sm:$0xff]
    %v107 = vld [vmem:[#allocation2 + $0xa0] sm:$0xff]
    %v108 = vld [vmem:[#allocation2 + $0xa8] sm:$0xff]
    %v109 = vld [vmem:[#allocation2 + $0xb0] sm:$0xff]
    %v110 = vld [vmem:[#allocation2 + $0xb8] sm:$0xff]
    %v111 = vld [vmem:[#allocation2 + $0xc0] sm:$0xff]
    %v112 = vld [vmem:[#allocation2 + $0xc8] sm:$0xff]
    %v113 = vld [vmem:[#allocation2 + $0xd0] sm:$0xff]
    %v114 = vld [vmem:[#allocation2 + $0xd8] sm:$0xff]
    %v115 = vld [vmem:[#allocation2 + $0xe0] sm:$0xff]
    %v116 = vld [vmem:[#allocation2 + $0xe8] sm:$0xff]
    %v117 = vld [vmem:[#allocation2 + $0xf0] sm:$0xff]
    %v118 = vld [vmem:[#allocation2 + $0xf8] sm:$0xff]
    %v119 = vld [vmem:[#allocation2 + $0x100] sm:$0xff]
    %v120 = vld [vmem:[#allocation2 + $0x108] sm:$0xff]
    %v121 = vld [vmem:[#allocation2 + $0x110] sm:$0xff]
    %v122 = vld [vmem:[#allocation2 + $0x118] sm:$0xff]
    %v123 = vld [vmem:[#allocation2 + $0x120] sm:$0xff]
    %v124 = vld [vmem:[#allocation2 + $0x128] sm:$0xff]
    %v125 = vld [vmem:[#allocation2 + $0x130] sm:$0xff]
    %v126 = vld [vmem:[#allocation2 + $0x138] sm:$0xff]
    %v127 = vld [vmem:[#allocation2 + $0x140] sm:$0xff]
    %v128 = vld [vmem:[#allocation2 + $0x148] sm:$0xff]
    %v129 = vld [vmem:[#allocation2 + $0x150] sm:$0xff]
    %v130 = vld [vmem:[#allocation2 + $0x158] sm:$0xff]
    %v131 = vld [vmem:[#allocation2 + $0x160] sm:$0xff]
    %v132 = vld [vmem:[#allocation2 + $0x168] sm:$0xff]
    %v133 = vld [vmem:[#allocation2 + $0x170] sm:$0xff]
    %v134 = vld [vmem:[#allocation2 + $0x178] sm:$0xff]
    %v135 = vld [vmem:[#allocation2 + $0x180] sm:$0xff]
    %v136 = vld [vmem:[#allocation2 + $0x188] sm:$0xff]
    %v137 = vld [vmem:[#allocation2 + $0x190] sm:$0xff]
    %v138 = vld [vmem:[#allocation2 + $0x198] sm:$0xff]
    %v139 = vld [vmem:[#allocation2 + $0x1a0] sm:$0xff]
    %v140 = vld [vmem:[#allocation2 + $0x1a8] sm:$0xff]
    %v141 = vld [vmem:[#allocation2 + $0x1b0] sm:$0xff]
    %v142 = vld [vmem:[#allocation2 + $0x1b8] sm:$0xff]
    %v143 = vld [vmem:[#allocation2 + $0x1c0] sm:$0xff]
    %v144 = vld [vmem:[#allocation2 + $0x1c8] sm:$0xff]
    %v145 = vld [vmem:[#allocation2 + $0x1d0] sm:$0xff]
    %v146 = vld [vmem:[#allocation2 + $0x1d8] sm:$0xff]
    %v147 = vld [vmem:[#allocation2 + $0x1e0] sm:$0xff]
    %v148 = vld [vmem:[#allocation2 + $0x1e8] sm:$0xff]
    %v149 = vld [vmem:[#allocation2 + $0x1f0] sm:$0xff]
    %v150 = vld [vmem:[#allocation2 + $0x1f8] sm:$0xff]
    %v151 = vmul.f32 %v87, 0.99
    %v152 = vmul.f32 %v88, 0.99
    %v153 = vmul.f32 %v89, 0.99
    %v154 = vmul.f32 %v90, 0.99
    %v155 = vmul.f32 %v91, 0.99
    %v156 = vmul.f32 %v92, 0.99
    %v157 = vmul.f32 %v93, 0.99
    %v158 = vmul.f32 %v94, 0.99
    %v159 = vmul.f32 %v95, 0.99
    %v160 = vmul.f32 %v96, 0.99
    %v161 = vmul.f32 %v97, 0.99
    %v162 = vmul.f32 %v98, 0.99
    %v163 = vmul.f32 %v99, 0.99
    %v164 = vmul.f32 %v100, 0.99
    %v165 = vmul.f32 %v101, 0.99
    %v166 = vmul.f32 %v102, 0.99
    %v167 = vmul.f32 %v103, 0.99
    %v168 = vmul.f32 %v104, 0.99
    %v169 = vmul.f32 %v105, 0.99
    %v170 = vmul.f32 %v106, 0.99
    %v171 = vmul.f32 %v107, 0.99
    %v172 = vmul.f32 %v108, 0.99
    %v173 = vmul.f32 %v109, 0.99
    %v174 = vmul.f32 %v110, 0.99
    %v175 = vmul.f32 %v111, 0.99
    %v176 = vmul.f32 %v112, 0.99
    %v177 = vmul.f32 %v113, 0.99
    %v178 = vmul.f32 %v114, 0.99
    %v179 = vmul.f32 %v115, 0.99
    %v180 = vmul.f32 %v116, 0.99
    %v181 = vmul.f32 %v117, 0.99
    %v182 = vmul.f32 %v118, 0.99
    %v183 = vmul.f32 %v119, 0.99
    %v184 = vmul.f32 %v120, 0.99
    %v185 = vmul.f32 %v121, 0.99
    %v186 = vmul.f32 %v122, 0.99
    %v187 = vmul.f32 %v123, 0.99
    %v188 = vmul.f32 %v124, 0.99
    %v189 = vmul.f32 %v125, 0.99
    %v190 = vmul.f32 %v126, 0.99
    %v191 = vmul.f32 %v127, 0.99
    %v192 = vmul.f32 %v128, 0.99
    %v193 = vmul.f32 %v129, 0.99
    %v194 = vmul.f32 %v130, 0.99
    %v195 = vmul.f32 %v131, 0.99
    %v196 = vmul.f32 %v132, 0.99
    %v197 = vmul.f32 %v133, 0.99
    %v198 = vmul.f32 %v134, 0.99
    %v199 = vmul.f32 %v135, 0.99
    %v200 = vmul.f32 %v136, 0.99
    %v201 = vmul.f32 %v137, 0.99
    %v202 = vmul.f32 %v138, 0.99
    %v203 = vmul.f32 %v139, 0.99
    %v204 = vmul.f32 %v140, 0.99
    %v205 = vmul.f32 %v141, 0.99
    %v206 = vmul.f32 %v142, 0.99
    %v207 = vmul.f32 %v143, 0.99
    %v208 = vmul.f32 %v144, 0.99
    %v209 = vmul.f32 %v145, 0.99
    %v210 = vmul.f32 %v146, 0.99
    %v211 = vmul.f32 %v147, 0.99
    %v212 = vmul.f32 %v148, 0.99
    %v213 = vmul.f32 %v149, 0.99
    %v214 = vmul.f32 %v150, 0.99
    %v215 = vld [vmem:[%s4] sm:$0xff]
    %v216 = vld [vmem:[%s4 + $0x8] sm:$0xff]
    %v217 = vld [vmem:[%s4 + $0x10] sm:$0xff]
    %v218 = vld [vmem:[%s4 + $0x18] sm:$0xff]
    %v219 = vld [vmem:[%s4 + $0x20] sm:$0xff]
    %v220 = vld [vmem:[%s4 + $0x28] sm:$0xff]
    %v221 = vld [vmem:[%s4 + $0x30] sm:$0xff]
    %v222 = vld [vmem:[%s4 + $0x38] sm:$0xff]
    %v223 = vld [vmem:[%s4 + $0x40] sm:$0xff]
    %v224 = vld [vmem:[%s4 + $0x48] sm:$0xff]
    %v225 = vld [vmem:[%s4 + $0x50] sm:$0xff]
    %v226 = vld [vmem:[%s4 + $0x58] sm:$0xff]
    %v227 = vld [vmem:[%s4 + $0x60] sm:$0xff]
    %v228 = vld [vmem:[%s4 + $0x68] sm:$0xff]
    %v229 = vld [vmem:[%s4 + $0x70] sm:$0xff]
    %v230 = vld [vmem:[%s4 + $0x78] sm:$0xff]
    %v231 = vld [vmem:[%s4 + $0x80] sm:$0xff]
    %v232 = vld [vmem:[%s4 + $0x88] sm:$0xff]
    %v233 = vld [vmem:[%s4 + $0x90] sm:$0xff]
    %v234 = vld [vmem:[%s4 + $0x98] sm:$0xff]
    %v235 = vld [vmem:[%s4 + $0xa0] sm:$0xff]
    %v236 = vld [vmem:[%s4 + $0xa8] sm:$0xff]
    %v237 = vld [vmem:[%s4 + $0xb0] sm:$0xff]
    %v238 = vld [vmem:[%s4 + $0xb8] sm:$0xff]
    %v239 = vld [vmem:[%s4 + $0xc0] sm:$0xff]
    %v240 = vld [vmem:[%s4 + $0xc8] sm:$0xff]
    %v241 = vld [vmem:[%s4 + $0xd0] sm:$0xff]
    %v242 = vld [vmem:[%s4 + $0xd8] sm:$0xff]
    %v243 = vld [vmem:[%s4 + $0xe0] sm:$0xff]
    %v244 = vld [vmem:[%s4 + $0xe8] sm:$0xff]
    %v245 = vld [vmem:[%s4 + $0xf0] sm:$0xff]
    %v246 = vld [vmem:[%s4 + $0xf8] sm:$0xff]
    %v247 = vld [vmem:[%s4 + $0x100] sm:$0xff]
    %v248 = vld [vmem:[%s4 + $0x108] sm:$0xff]
    %v249 = vld [vmem:[%s4 + $0x110] sm:$0xff]
    %v250 = vld [vmem:[%s4 + $0x118] sm:$0xff]
    %v251 = vld [vmem:[%s4 + $0x120] sm:$0xff]
    %v252 = vld [vmem:[%s4 + $0x128] sm:$0xff]
    %v253 = vld [vmem:[%s4 + $0x130] sm:$0xff]
    %v254 = vld [vmem:[%s4 + $0x138] sm:$0xff]
    %v255 = vld [vmem:[%s4 + $0x140] sm:$0xff]
    %v256 = vld [vmem:[%s4 + $0x148] sm:$0xff]
    %v257 = vld [vmem:[%s4 + $0x150] sm:$0xff]
    %v258 = vld [vmem:[%s4 + $0x158] sm:$0xff]
    %v259 = vld [vmem:[%s4 + $0x160] sm:$0xff]
    %v260 = vld [vmem:[%s4 + $0x168] sm:$0xff]
    %v261 = vld [vmem:[%s4 + $0x170] sm:$0xff]
    %v262 = vld [vmem:[%s4 + $0x178] sm:$0xff]
    %v263 = vld [vmem:[%s4 + $0x180] sm:$0xff]
    %v264 = vld [vmem:[%s4 + $0x188] sm:$0xff]
    %v265 = vld [vmem:[%s4 + $0x190] sm:$0xff]
    %v266 = vld [vmem:[%s4 + $0x198] sm:$0xff]
    %v267 = vld [vmem:[%s4 + $0x1a0] sm:$0xff]
    %v268 = vld [vmem:[%s4 + $0x1a8] sm:$0xff]
    %v269 = vld [vmem:[%s4 + $0x1b0] sm:$0xff]
    %v270 = vld [vmem:[%s4 + $0x1b8] sm:$0xff]
    %v271 = vld [vmem:[%s4 + $0x1c0] sm:$0xff]
    %v272 = vld [vmem:[%s4 + $0x1c8] sm:$0xff]
    %v273 = vld [vmem:[%s4 + $0x1d0] sm:$0xff]
    %v274 = vld [vmem:[%s4 + $0x1d8] sm:$0xff]
    %v275 = vld [vmem:[%s4 + $0x1e0] sm:$0xff]
    %v276 = vld [vmem:[%s4 + $0x1e8] sm:$0xff]
    %v277 = vld [vmem:[%s4 + $0x1f0] sm:$0xff]
    %v278 = vld [vmem:[%s4 + $0x1f8] sm:$0xff]
    %v279 = vmul.f32 %v215, 0.01
    %v280 = vmul.f32 %v216, 0.01
    %v281 = vmul.f32 %v217, 0.01
    %v282 = vmul.f32 %v218, 0.01
    %v283 = vmul.f32 %v219, 0.01
    %v284 = vmul.f32 %v220, 0.01
    %v285 = vmul.f32 %v221, 0.01
    %v286 = vmul.f32 %v222, 0.01
    %v287 = vmul.f32 %v223, 0.01
    %v288 = vmul.f32 %v224, 0.01
    %v289 = vmul.f32 %v225, 0.01
    %v290 = vmul.f32 %v226, 0.01
    %v291 = vmul.f32 %v227, 0.01
    %v292 = vmul.f32 %v228, 0.01
    %v293 = vmul.f32 %v229, 0.01
    %v294 = vmul.f32 %v230, 0.01
    %v295 = vmul.f32 %v231, 0.01
    %v296 = vmul.f32 %v232, 0.01
    %v297 = vmul.f32 %v233, 0.01
    %v298 = vmul.f32 %v234, 0.01
    %v299 = vmul.f32 %v235, 0.01
    %v300 = vmul.f32 %v236, 0.01
    %v301 = vmul.f32 %v237, 0.01
    %v302 = vmul.f32 %v238, 0.01
    %v303 = vmul.f32 %v239, 0.01
    %v304 = vmul.f32 %v240, 0.01
    %v305 = vmul.f32 %v241, 0.01
    %v306 = vmul.f32 %v242, 0.01
    %v307 = vmul.f32 %v243, 0.01
    %v308 = vmul.f32 %v244, 0.01
    %v309 = vmul.f32 %v245, 0.01
    %v310 = vmul.f32 %v246, 0.01
    %v311 = vmul.f32 %v247, 0.01
    %v312 = vmul.f32 %v248, 0.01
    %v313 = vmul.f32 %v249, 0.01
    %v314 = vmul.f32 %v250, 0.01
    %v315 = vmul.f32 %v251, 0.01
    %v316 = vmul.f32 %v252, 0.01
    %v317 = vmul.f32 %v253, 0.01
    %v318 = vmul.f32 %v254, 0.01
    %v319 = vmul.f32 %v255, 0.01
    %v320 = vmul.f32 %v256, 0.01
    %v321 = vmul.f32 %v257, 0.01
    %v322 = vmul.f32 %v258, 0.01
    %v323 = vmul.f32 %v259, 0.01
    %v324 = vmul.f32 %v260, 0.01
    %v325 = vmul.f32 %v261, 0.01
    %v326 = vmul.f32 %v262, 0.01
    %v327 = vmul.f32 %v263, 0.01
    %v328 = vmul.f32 %v264, 0.01
    %v329 = vmul.f32 %v265, 0.01
    %v330 = vmul.f32 %v266, 0.01
    %v331 = vmul.f32 %v267, 0.01
    %v332 = vmul.f32 %v268, 0.01
    %v333 = vmul.f32 %v269, 0.01
    %v334 = vmul.f32 %v270, 0.01
    %v335 = vmul.f32 %v271, 0.01
    %v336 = vmul.f32 %v272, 0.01
    %v337 = vmul.f32 %v273, 0.01
    %v338 = vmul.f32 %v274, 0.01
    %v339 = vmul.f32 %v275, 0.01
    %v340 = vmul.f32 %v276, 0.01
    %v341 = vmul.f32 %v277, 0.01
    %v342 = vmul.f32 %v278, 0.01
    %v343 = vadd.f32 %v151, %v279
    %v344 = vadd.f32 %v152, %v280
    %v345 = vadd.f32 %v153, %v281
    %v346 = vadd.f32 %v154, %v282
    %v347 = vadd.f32 %v155, %v283
    %v348 = vadd.f32 %v156, %v284
    %v349 = vadd.f32 %v157, %v285
    %v350 = vadd.f32 %v158, %v286
    %v351 = vadd.f32 %v159, %v287
    %v352 = vadd.f32 %v160, %v288
    %v353 = vadd.f32 %v161, %v289
    %v354 = vadd.f32 %v162, %v290
    %v355 = vadd.f32 %v163, %v291
    %v356 = vadd.f32 %v164, %v292
    %v357 = vadd.f32 %v165, %v293
    %v358 = vadd.f32 %v166, %v294
    %v359 = vadd.f32 %v167, %v295
    %v360 = vadd.f32 %v168, %v296
    %v361 = vadd.f32 %v169, %v297
    %v362 = vadd.f32 %v170, %v298
    %v363 = vadd.f32 %v171, %v299
    %v364 = vadd.f32 %v172, %v300
    %v365 = vadd.f32 %v173, %v301
    %v366 = vadd.f32 %v174, %v302
    %v367 = vadd.f32 %v175, %v303
    %v368 = vadd.f32 %v176, %v304
    %v369 = vadd.f32 %v177, %v305
    %v370 = vadd.f32 %v178, %v306
    %v371 = vadd.f32 %v179, %v307
    %v372 = vadd.f32 %v180, %v308
    %v373 = vadd.f32 %v181, %v309
    %v374 = vadd.f32 %v182, %v310
    %v375 = vadd.f32 %v183, %v311
    %v376 = vadd.f32 %v184, %v312
    %v377 = vadd.f32 %v185, %v313
    %v378 = vadd.f32 %v186, %v314
    %v379 = vadd.f32 %v187, %v315
    %v380 = vadd.f32 %v188, %v316
    %v381 = vadd.f32 %v189, %v317
    %v382 = vadd.f32 %v190, %v318
    %v383 = vadd.f32 %v191, %v319
    %v384 = vadd.f32 %v192, %v320
    %v385 = vadd.f32 %v193, %v321
    %v386 = vadd.f32 %v194, %v322
    %v387 = vadd.f32 %v195, %v323
    %v388 = vadd.f32 %v196, %v324
    %v389 = vadd.f32 %v197, %v325
    %v390 = vadd.f32 %v198, %v326
    %v391 = vadd.f32 %v199, %v327
    %v392 = vadd.f32 %v200, %v328
    %v393 = vadd.f32 %v201, %v329
    %v394 = vadd.f32 %v202, %v330
    %v395 = vadd.f32 %v203, %v331
    %v396 = vadd.f32 %v204, %v332
    %v397 = vadd.f32 %v205, %v333
    %v398 = vadd.f32 %v206, %v334
    %v399 = vadd.f32 %v207, %v335
    %v400 = vadd.f32 %v208, %v336
    %v401 = vadd.f32 %v209, %v337
    %v402 = vadd.f32 %v210, %v338
    %v403 = vadd.f32 %v211, %v339
    %v404 = vadd.f32 %v212, %v340
    %v405 = vadd.f32 %v213, %v341
    %v406 = vadd.f32 %v214, %v342
    %407 = vst [vmem:[#allocation10] sm:$0xff] %v343
    %408 = vst [vmem:[#allocation10 + $0x8] sm:$0xff] %v344
    %409 = vst [vmem:[#allocation10 + $0x10] sm:$0xff] %v345
    %410 = vst [vmem:[#allocation10 + $0x18] sm:$0xff] %v346
    %411 = vst [vmem:[#allocation10 + $0x20] sm:$0xff] %v347
    %412 = vst [vmem:[#allocation10 + $0x28] sm:$0xff] %v348
    %413 = vst [vmem:[#allocation10 + $0x30] sm:$0xff] %v349
    %414 = vst [vmem:[#allocation10 + $0x38] sm:$0xff] %v350
    %415 = vst [vmem:[#allocation10 + $0x40] sm:$0xff] %v351
    %416 = vst [vmem:[#allocation10 + $0x48] sm:$0xff] %v352
    %417 = vst [vmem:[#allocation10 + $0x50] sm:$0xff] %v353
    %418 = vst [vmem:[#allocation10 + $0x58] sm:$0xff] %v354
    %419 = vst [vmem:[#allocation10 + $0x60] sm:$0xff] %v355
    %420 = vst [vmem:[#allocation10 + $0x68] sm:$0xff] %v356
    %421 = vst [vmem:[#allocation10 + $0x70] sm:$0xff] %v357
    %422 = vst [vmem:[#allocation10 + $0x78] sm:$0xff] %v358
    %423 = vst [vmem:[#allocation10 + $0x80] sm:$0xff] %v359
    %424 = vst [vmem:[#allocation10 + $0x88] sm:$0xff] %v360
    %425 = vst [vmem:[#allocation10 + $0x90] sm:$0xff] %v361
    %426 = vst [vmem:[#allocation10 + $0x98] sm:$0xff] %v362
    %427 = vst [vmem:[#allocation10 + $0xa0] sm:$0xff] %v363
    %428 = vst [vmem:[#allocation10 + $0xa8] sm:$0xff] %v364
    %429 = vst [vmem:[#allocation10 + $0xb0] sm:$0xff] %v365
    %430 = vst [vmem:[#allocation10 + $0xb8] sm:$0xff] %v366
    %431 = vst [vmem:[#allocation10 + $0xc0] sm:$0xff] %v367
    %432 = vst [vmem:[#allocation10 + $0xc8] sm:$0xff] %v368
    %433 = vst [vmem:[#allocation10 + $0xd0] sm:$0xff] %v369
    %434 = vst [vmem:[#allocation10 + $0xd8] sm:$0xff] %v370
    %435 = vst [vmem:[#allocation10 + $0xe0] sm:$0xff] %v371
    %436 = vst [vmem:[#allocation10 + $0xe8] sm:$0xff] %v372
    %437 = vst [vmem:[#allocation10 + $0xf0] sm:$0xff] %v373
    %438 = vst [vmem:[#allocation10 + $0xf8] sm:$0xff] %v374
    %439 = vst [vmem:[#allocation10 + $0x100] sm:$0xff] %v375
    %440 = vst [vmem:[#allocation10 + $0x108] sm:$0xff] %v376
    %441 = vst [vmem:[#allocation10 + $0x110] sm:$0xff] %v377
    %442 = vst [vmem:[#allocation10 + $0x118] sm:$0xff] %v378
    %443 = vst [vmem:[#allocation10 + $0x120] sm:$0xff] %v379
    %444 = vst [vmem:[#allocation10 + $0x128] sm:$0xff] %v380
    %445 = vst [vmem:[#allocation10 + $0x130] sm:$0xff] %v381
    %446 = vst [vmem:[#allocation10 + $0x138] sm:$0xff] %v382
    %447 = vst [vmem:[#allocation10 + $0x140] sm:$0xff] %v383
    %448 = vst [vmem:[#allocation10 + $0x148] sm:$0xff] %v384
    %449 = vst [vmem:[#allocation10 + $0x150] sm:$0xff] %v385
    %450 = vst [vmem:[#allocation10 + $0x158] sm:$0xff] %v386
    %451 = vst [vmem:[#allocation10 + $0x160] sm:$0xff] %v387
    %452 = vst [vmem:[#allocation10 + $0x168] sm:$0xff] %v388
    %453 = vst [vmem:[#allocation10 + $0x170] sm:$0xff] %v389
    %454 = vst [vmem:[#allocation10 + $0x178] sm:$0xff] %v390
    %455 = vst [vmem:[#allocation10 + $0x180] sm:$0xff] %v391
    %456 = vst [vmem:[#allocation10 + $0x188] sm:$0xff] %v392
    %457 = vst [vmem:[#allocation10 + $0x190] sm:$0xff] %v393
    %458 = vst [vmem:[#allocation10 + $0x198] sm:$0xff] %v394
    %459 = vst [vmem:[#allocation10 + $0x1a0] sm:$0xff] %v395
    %460 = vst [vmem:[#allocation10 + $0x1a8] sm:$0xff] %v396
    %461 = vst [vmem:[#allocation10 + $0x1b0] sm:$0xff] %v397
    %462 = vst [vmem:[#allocation10 + $0x1b8] sm:$0xff] %v398
    %463 = vst [vmem:[#allocation10 + $0x1c0] sm:$0xff] %v399
    %464 = vst [vmem:[#allocation10 + $0x1c8] sm:$0xff] %v400
    %465 = vst [vmem:[#allocation10 + $0x1d0] sm:$0xff] %v401
    %466 = vst [vmem:[#allocation10 + $0x1d8] sm:$0xff] %v402
    %467 = vst [vmem:[#allocation10 + $0x1e0] sm:$0xff] %v403
    %468 = vst [vmem:[#allocation10 + $0x1e8] sm:$0xff] %v404
    %469 = vst [vmem:[#allocation10 + $0x1f0] sm:$0xff] %v405
    %470 = vst [vmem:[#allocation10 + $0x1f8] sm:$0xff] %v406
    %v471 = vld [vmem:[#allocation5] sm:$0x3]
    %v472 = vmul.f32 %v471, 0.99
    %v473 = vld [vmem:[%s5] sm:$0x3]
    %v474 = vmul.f32 %v473, 0.01
    %v475 = vadd.f32 %v472, %v474
    %v476 = vlaneseq
    %vm477 = vcmp.ge.s32.totalorder %v476, 0
    %vm478 = vcmp.lt.s32.totalorder %v476, 256
    %vm479 = vmand %vm477, %vm478
    %480 = vst.msk [vmem:[#allocation11] sm:$0x3] %vm479, %v475
    %v481 = vld [vmem:[#allocation7] sm:$0x3]
    %v482 = vmul.f32 %v481, 0.99
    %v483 = vld [vmem:[%s6] sm:$0x3]
    %v484 = vmul.f32 %v483, 0.01
    %v485 = vadd.f32 %v482, %v484
    %486 = vst.msk [vmem:[#allocation13] sm:$0x3] %vm479, %v485
    %v487 = vld [vmem:[#allocation8] sm:$0xff]
    %v488 = vld [vmem:[#allocation8 + $0x8] sm:$0xff]
    %v489 = vld [vmem:[#allocation8 + $0x10] sm:$0xff]
    %v490 = vld [vmem:[#allocation8 + $0x18] sm:$0xff]
    %v491 = vld [vmem:[#allocation8 + $0x20] sm:$0xff]
    %v492 = vld [vmem:[#allocation8 + $0x28] sm:$0xff]
    %v493 = vld [vmem:[#allocation8 + $0x30] sm:$0xff]
    %v494 = vld [vmem:[#allocation8 + $0x38] sm:$0xff]
    %v495 = vld [vmem:[#allocation8 + $0x40] sm:$0xff]
    %v496 = vld [vmem:[#allocation8 + $0x48] sm:$0xff]
    %v497 = vld [vmem:[#allocation8 + $0x50] sm:$0xff]
    %v498 = vld [vmem:[#allocation8 + $0x58] sm:$0xff]
    %v499 = vld [vmem:[#allocation8 + $0x60] sm:$0xff]
    %v500 = vld [vmem:[#allocation8 + $0x68] sm:$0xff]
    %v501 = vld [vmem:[#allocation8 + $0x70] sm:$0xff]
    %v502 = vld [vmem:[#allocation8 + $0x78] sm:$0xff]
    %v503 = vld [vmem:[#allocation8 + $0x80] sm:$0xff]
    %v504 = vld [vmem:[#allocation8 + $0x88] sm:$0xff]
    %v505 = vld [vmem:[#allocation8 + $0x90] sm:$0xff]
    %v506 = vld [vmem:[#allocation8 + $0x98] sm:$0xff]
    %v507 = vld [vmem:[#allocation8 + $0xa0] sm:$0xff]
    %v508 = vld [vmem:[#allocation8 + $0xa8] sm:$0xff]
    %v509 = vld [vmem:[#allocation8 + $0xb0] sm:$0xff]
    %v510 = vld [vmem:[#allocation8 + $0xb8] sm:$0xff]
    %v511 = vld [vmem:[#allocation8 + $0xc0] sm:$0xff]
    %v512 = vld [vmem:[#allocation8 + $0xc8] sm:$0xff]
    %v513 = vld [vmem:[#allocation8 + $0xd0] sm:$0xff]
    %v514 = vld [vmem:[#allocation8 + $0xd8] sm:$0xff]
    %v515 = vld [vmem:[#allocation8 + $0xe0] sm:$0xff]
    %v516 = vld [vmem:[#allocation8 + $0xe8] sm:$0xff]
    %v517 = vld [vmem:[#allocation8 + $0xf0] sm:$0xff]
    %v518 = vld [vmem:[#allocation8 + $0xf8] sm:$0xff]
    %v519 = vmul.f32 %v487, 0.99
    %v520 = vmul.f32 %v488, 0.99
    %v521 = vmul.f32 %v489, 0.99
    %v522 = vmul.f32 %v490, 0.99
    %v523 = vmul.f32 %v491, 0.99
    %v524 = vmul.f32 %v492, 0.99
    %v525 = vmul.f32 %v493, 0.99
    %v526 = vmul.f32 %v494, 0.99
    %v527 = vmul.f32 %v495, 0.99
    %v528 = vmul.f32 %v496, 0.99
    %v529 = vmul.f32 %v497, 0.99
    %v530 = vmul.f32 %v498, 0.99
    %v531 = vmul.f32 %v499, 0.99
    %v532 = vmul.f32 %v500, 0.99
    %v533 = vmul.f32 %v501, 0.99
    %v534 = vmul.f32 %v502, 0.99
    %v535 = vmul.f32 %v503, 0.99
    %v536 = vmul.f32 %v504, 0.99
    %v537 = vmul.f32 %v505, 0.99
    %v538 = vmul.f32 %v506, 0.99
    %v539 = vmul.f32 %v507, 0.99
    %v540 = vmul.f32 %v508, 0.99
    %v541 = vmul.f32 %v509, 0.99
    %v542 = vmul.f32 %v510, 0.99
    %v543 = vmul.f32 %v511, 0.99
    %v544 = vmul.f32 %v512, 0.99
    %v545 = vmul.f32 %v513, 0.99
    %v546 = vmul.f32 %v514, 0.99
    %v547 = vmul.f32 %v515, 0.99
    %v548 = vmul.f32 %v516, 0.99
    %v549 = vmul.f32 %v517, 0.99
    %v550 = vmul.f32 %v518, 0.99
    %v551 = vld [vmem:[%s7] sm:$0xff]
    %v552 = vld [vmem:[%s7 + $0x8] sm:$0xff]
    %v553 = vld [vmem:[%s7 + $0x10] sm:$0xff]
    %v554 = vld [vmem:[%s7 + $0x18] sm:$0xff]
    %v555 = vld [vmem:[%s7 + $0x20] sm:$0xff]
    %v556 = vld [vmem:[%s7 + $0x28] sm:$0xff]
    %v557 = vld [vmem:[%s7 + $0x30] sm:$0xff]
    %v558 = vld [vmem:[%s7 + $0x38] sm:$0xff]
    %v559 = vld [vmem:[%s7 + $0x40] sm:$0xff]
    %v560 = vld [vmem:[%s7 + $0x48] sm:$0xff]
    %v561 = vld [vmem:[%s7 + $0x50] sm:$0xff]
    %v562 = vld [vmem:[%s7 + $0x58] sm:$0xff]
    %v563 = vld [vmem:[%s7 + $0x60] sm:$0xff]
    %v564 = vld [vmem:[%s7 + $0x68] sm:$0xff]
    %v565 = vld [vmem:[%s7 + $0x70] sm:$0xff]
    %v566 = vld [vmem:[%s7 + $0x78] sm:$0xff]
    %v567 = vld [vmem:[%s7 + $0x80] sm:$0xff]
    %v568 = vld [vmem:[%s7 + $0x88] sm:$0xff]
    %v569 = vld [vmem:[%s7 + $0x90] sm:$0xff]
    %v570 = vld [vmem:[%s7 + $0x98] sm:$0xff]
    %v571 = vld [vmem:[%s7 + $0xa0] sm:$0xff]
    %v572 = vld [vmem:[%s7 + $0xa8] sm:$0xff]
    %v573 = vld [vmem:[%s7 + $0xb0] sm:$0xff]
    %v574 = vld [vmem:[%s7 + $0xb8] sm:$0xff]
    %v575 = vld [vmem:[%s7 + $0xc0] sm:$0xff]
    %v576 = vld [vmem:[%s7 + $0xc8] sm:$0xff]
    %v577 = vld [vmem:[%s7 + $0xd0] sm:$0xff]
    %v578 = vld [vmem:[%s7 + $0xd8] sm:$0xff]
    %v579 = vld [vmem:[%s7 + $0xe0] sm:$0xff]
    %v580 = vld [vmem:[%s7 + $0xe8] sm:$0xff]
    %v581 = vld [vmem:[%s7 + $0xf0] sm:$0xff]
    %v582 = vld [vmem:[%s7 + $0xf8] sm:$0xff]
    %v583 = vmul.f32 %v551, 0.01
    %v584 = vmul.f32 %v552, 0.01
    %v585 = vmul.f32 %v553, 0.01
    %v586 = vmul.f32 %v554, 0.01
    %v587 = vmul.f32 %v555, 0.01
    %v588 = vmul.f32 %v556, 0.01
    %v589 = vmul.f32 %v557, 0.01
    %v590 = vmul.f32 %v558, 0.01
    %v591 = vmul.f32 %v559, 0.01
    %v592 = vmul.f32 %v560, 0.01
    %v593 = vmul.f32 %v561, 0.01
    %v594 = vmul.f32 %v562, 0.01
    %v595 = vmul.f32 %v563, 0.01
    %v596 = vmul.f32 %v564, 0.01
    %v597 = vmul.f32 %v565, 0.01
    %v598 = vmul.f32 %v566, 0.01
    %v599 = vmul.f32 %v567, 0.01
    %v600 = vmul.f32 %v568, 0.01
    %v601 = vmul.f32 %v569, 0.01
    %v602 = vmul.f32 %v570, 0.01
    %v603 = vmul.f32 %v571, 0.01
    %v604 = vmul.f32 %v572, 0.01
    %v605 = vmul.f32 %v573, 0.01
    %v606 = vmul.f32 %v574, 0.01
    %v607 = vmul.f32 %v575, 0.01
    %v608 = vmul.f32 %v576, 0.01
    %v609 = vmul.f32 %v577, 0.01
    %v610 = vmul.f32 %v578, 0.01
    %v611 = vmul.f32 %v579, 0.01
    %v612 = vmul.f32 %v580, 0.01
    %v613 = vmul.f32 %v581, 0.01
    %v614 = vmul.f32 %v582, 0.01
    %v615 = vadd.f32 %v519, %v583
    %v616 = vadd.f32 %v520, %v584
    %v617 = vadd.f32 %v521, %v585
    %v618 = vadd.f32 %v522, %v586
    %v619 = vadd.f32 %v523, %v587
    %v620 = vadd.f32 %v524, %v588
    %v621 = vadd.f32 %v525, %v589
    %v622 = vadd.f32 %v526, %v590
    %v623 = vadd.f32 %v527, %v591
    %v624 = vadd.f32 %v528, %v592
    %v625 = vadd.f32 %v529, %v593
    %v626 = vadd.f32 %v530, %v594
    %v627 = vadd.f32 %v531, %v595
    %v628 = vadd.f32 %v532, %v596
    %v629 = vadd.f32 %v533, %v597
    %v630 = vadd.f32 %v534, %v598
    %v631 = vadd.f32 %v535, %v599
    %v632 = vadd.f32 %v536, %v600
    %v633 = vadd.f32 %v537, %v601
    %v634 = vadd.f32 %v538, %v602
    %v635 = vadd.f32 %v539, %v603
    %v636 = vadd.f32 %v540, %v604
    %v637 = vadd.f32 %v541, %v605
    %v638 = vadd.f32 %v542, %v606
    %v639 = vadd.f32 %v543, %v607
    %v640 = vadd.f32 %v544, %v608
    %v641 = vadd.f32 %v545, %v609
    %v642 = vadd.f32 %v546, %v610
    %v643 = vadd.f32 %v547, %v611
    %v644 = vadd.f32 %v548, %v612
    %v645 = vadd.f32 %v549, %v613
    %v646 = vadd.f32 %v550, %v614
    %647 = vst [vmem:[#allocation14] sm:$0xff] %v615
    %648 = vst [vmem:[#allocation14 + $0x8] sm:$0xff] %v616
    %649 = vst [vmem:[#allocation14 + $0x10] sm:$0xff] %v617
    %650 = vst [vmem:[#allocation14 + $0x18] sm:$0xff] %v618
    %651 = vst [vmem:[#allocation14 + $0x20] sm:$0xff] %v619
    %652 = vst [vmem:[#allocation14 + $0x28] sm:$0xff] %v620
    %653 = vst [vmem:[#allocation14 + $0x30] sm:$0xff] %v621
    %654 = vst [vmem:[#allocation14 + $0x38] sm:$0xff] %v622
    %655 = vst [vmem:[#allocation14 + $0x40] sm:$0xff] %v623
    %656 = vst [vmem:[#allocation14 + $0x48] sm:$0xff] %v624
    %657 = vst [vmem:[#allocation14 + $0x50] sm:$0xff] %v625
    %658 = vst [vmem:[#allocation14 + $0x58] sm:$0xff] %v626
    %659 = vst [vmem:[#allocation14 + $0x60] sm:$0xff] %v627
    %660 = vst [vmem:[#allocation14 + $0x68] sm:$0xff] %v628
    %661 = vst [vmem:[#allocation14 + $0x70] sm:$0xff] %v629
    %662 = vst [vmem:[#allocation14 + $0x78] sm:$0xff] %v630
    %663 = vst [vmem:[#allocation14 + $0x80] sm:$0xff] %v631
    %664 = vst [vmem:[#allocation14 + $0x88] sm:$0xff] %v632
    %665 = vst [vmem:[#allocation14 + $0x90] sm:$0xff] %v633
    %666 = vst [vmem:[#allocation14 + $0x98] sm:$0xff] %v634
    %667 = vst [vmem:[#allocation14 + $0xa0] sm:$0xff] %v635
    %668 = vst [vmem:[#allocation14 + $0xa8] sm:$0xff] %v636
    %669 = vst [vmem:[#allocation14 + $0xb0] sm:$0xff] %v637
    %670 = vst [vmem:[#allocation14 + $0xb8] sm:$0xff] %v638
    %671 = vst [vmem:[#allocation14 + $0xc0] sm:$0xff] %v639
    %672 = vst [vmem:[#allocation14 + $0xc8] sm:$0xff] %v640
    %673 = vst [vmem:[#allocation14 + $0xd0] sm:$0xff] %v641
    %674 = vst [vmem:[#allocation14 + $0xd8] sm:$0xff] %v642
    %675 = vst [vmem:[#allocation14 + $0xe0] sm:$0xff] %v643
    %676 = vst [vmem:[#allocation14 + $0xe8] sm:$0xff] %v644
    %677 = vst [vmem:[#allocation14 + $0xf0] sm:$0xff] %v645
    %678 = vst [vmem:[#allocation14 + $0xf8] sm:$0xff] %v646
    // Predicated region
    $region50: #{tpu_custom_call.1} parent=1 // pred_check
      _
    $region51: #{tpu_custom_call.1} parent=1 // pred_check_branch
      %680 = sbr.rel (0) target = $region53
    $region52: #{tpu_custom_call.1} parent=1 // pred_region
      %s682 = ssub.s32 8192, 8192
      %683 = vsyncadd [#allocation4], %s682
      %s684 = sshll.u32 [#allocation10], 4
      %s685 = int_to_ptr.vmem [resolvable:$true] %s684
      %690 = dma.vmem_to_hbm [thread:$0]  %s685, 8192, %s8, [#allocation4], 256, 256, 16
    $region53: #{tpu_custom_call.1} parent=1 // pred_fallthru
      _
    // Predicated region
    $region54: #{tpu_custom_call.1} parent=1 // pred_check
      _
    $region55: #{tpu_custom_call.1} parent=1 // pred_check_branch
      %692 = sbr.rel (0) target = $region57
    $region56: #{tpu_custom_call.1} parent=1 // pred_region
      %s694 = ssub.s32 32, 32
      %695 = vsyncadd [#allocation12], %s694
      %s697 = sshll.u32 [#allocation11], 4
      %s698 = int_to_ptr.vmem [resolvable:$true] %s697
      %700 = dma.vmem_to_hbm [thread:$0]  %s698, 32, %s9, [#allocation12]
    $region57: #{tpu_custom_call.1} parent=1 // pred_fallthru
      _
    // Predicated region
    $region58: #{tpu_custom_call.1} parent=1 // pred_check
      _
    $region59: #{tpu_custom_call.1} parent=1 // pred_check_branch
      %702 = sbr.rel (0) target = $region61
    $region60: #{tpu_custom_call.1} parent=1 // pred_region
      %s704 = ssub.s32 32, 32
      %705 = vsyncadd [#allocation12], %s704
      %s707 = sshll.u32 [#allocation13], 4
      %s708 = int_to_ptr.vmem [resolvable:$true] %s707
      %710 = dma.vmem_to_hbm [thread:$0]  %s708, 32, %s10, [#allocation12]
    $region61: #{tpu_custom_call.1} parent=1 // pred_fallthru
      _
    // Predicated region
    $region62: #{tpu_custom_call.1} parent=1 // pred_check
      _
    $region63: #{tpu_custom_call.1} parent=1 // pred_check_branch
      %712 = sbr.rel (0) target = $region65
    $region64: #{tpu_custom_call.1} parent=1 // pred_region
      %s714 = ssub.s32 4096, 4096
      %715 = vsyncadd [#allocation15], %s714
      %s716 = sshll.u32 [#allocation14], 4
      %s717 = int_to_ptr.vmem [resolvable:$true] %s716
      %722 = dma.vmem_to_hbm [thread:$0]  %s717, 4096, %s11, [#allocation15], 128, 128, 8
    $region65: #{tpu_custom_call.1} parent=1 // pred_fallthru
      _
    // Predicated region
    $region66: #{tpu_custom_call.1} parent=1 // pred_check
      _
    $region67: #{tpu_custom_call.1} parent=1 // pred_check_branch
      %724 = sbr.rel (0) target = $region69
    $region68: #{tpu_custom_call.1} parent=1 // pred_region
      %725 = dma.done [#allocation4], 8192
    $region69: #{tpu_custom_call.1} parent=1 // pred_fallthru
      _
    // Predicated region
    $region70: #{tpu_custom_call.1} parent=1 // pred_check
      _
    $region71: #{tpu_custom_call.1} parent=1 // pred_check_branch
      %727 = sbr.rel (0) target = $region73
    $region72: #{tpu_custom_call.1} parent=1 // pred_region
      %728 = dma.done [#allocation12], 32
    $region73: #{tpu_custom_call.1} parent=1 // pred_fallthru
      _
    // Predicated region
    $region74: #{tpu_custom_call.1} parent=1 // pred_check
      _
    $region75: #{tpu_custom_call.1} parent=1 // pred_check_branch
      %730 = sbr.rel (0) target = $region77
    $region76: #{tpu_custom_call.1} parent=1 // pred_region
      %731 = dma.done [#allocation12], 32
    $region77: #{tpu_custom_call.1} parent=1 // pred_fallthru
      _
    // Predicated region
    $region78: #{tpu_custom_call.1} parent=1 // pred_check
      _
    $region79: #{tpu_custom_call.1} parent=1 // pred_check_branch
      %733 = sbr.rel (0) target = $region81
    $region80: #{tpu_custom_call.1} parent=1 // pred_region
      %734 = dma.done [#allocation15], 4096
    $region81: #{tpu_custom_call.1} parent=1 // pred_fallthru
      _
    %735 = vsyncpa [#allocation3], 1
    %736 = vsyncpa [#allocation6], 1
    %737 = vsyncpa [#allocation9], 1
    %738 = vsyncpa [#allocation4], 1
    %739 = vsyncpa [#allocation12], 1
    %740 = vsyncpa [#allocation15], 1

</llo_original>
